<compile_context>
chip_gen: v6e
topology: v6e:2x2x1
jax: 0.10.0
libtpu: 0.0.40
codegen_flags: <defaults>
</compile_context>

<pallas_src>
import math
import functools

import jax
import jax.numpy as jnp
from jax import lax
from jax.experimental import pallas as pl
from jax.experimental.pallas import tpu as pltpu

EPS = 1e-5  # PyTorch LayerNorm default eps


def _sigmoid(x):
    return 1.0 / (1.0 + jnp.exp(-x))


def _layernorm(x, g, b):
    mean = jnp.mean(x, axis=-1, keepdims=True)
    var = jnp.mean((x - mean) ** 2, axis=-1, keepdims=True)
    return (x - mean) * lax.rsqrt(var + EPS) * g + b


# ---------------------------------------------------------------------------
# Kernel 1: input Linear + LayerNorm  (TransformerModel.encoder + encoder_norm)
# ---------------------------------------------------------------------------
def frontend_kernel(x_ref, w_ref, b_ref, g_ref, beta_ref, o_ref):
    h = jnp.dot(x_ref[0], w_ref[...], preferred_element_type=jnp.float32) + b_ref[...]
    o_ref[0] = _layernorm(h, g_ref[...], beta_ref[...])


def frontend(x, w_t, b, g, beta):
    B, T, F = x.shape
    D = w_t.shape[1]
    return pl.pallas_call(
        frontend_kernel,
        out_shape=jax.ShapeDtypeStruct((B, T, D), jnp.float32),
        grid=(B,),
        in_specs=[
            pl.BlockSpec((1, T, F), lambda i: (i, 0, 0)),
            pl.BlockSpec((F, D), lambda i: (0, 0)),
            pl.BlockSpec((1, D), lambda i: (0, 0)),
            pl.BlockSpec((1, D), lambda i: (0, 0)),
            pl.BlockSpec((1, D), lambda i: (0, 0)),
        ],
        out_specs=pl.BlockSpec((1, T, D), lambda i: (i, 0, 0)),
        compiler_params=pltpu.CompilerParams(dimension_semantics=("parallel",)),
    )(x, w_t, b, g, beta)


# ---------------------------------------------------------------------------
# Kernel 2: the whole TransformerEncoder stack (post-norm, ReLU FFN, MHA)
#   grid = (B, L); activation resident in the output VMEM block across L.
# ---------------------------------------------------------------------------
def stacked_encoder_kernel(x_ref, wqkv_ref, bqkv_ref, ow_ref, ob_ref,
                           w1_ref, b1_ref, w2_ref, b2_ref,
                           g1_ref, be1_ref, g2_ref, be2_ref, o_ref, *, n_heads):
    layer = pl.program_id(1)

    # layer 0 seeds the resident activation from the frontend output
    @pl.when(layer == 0)
    def _():
        o_ref[...] = x_ref[...]

    x = o_ref[0]                                    # (T, D) previous-layer output
    T, D = x.shape
    hd = D // n_heads
    scale = 1.0 / math.sqrt(hd)

    # fused QKV projection: one (T, D) @ (D, 3D) matmul (weights pre-transposed)
    qkv = jnp.dot(x, wqkv_ref[0], preferred_element_type=jnp.float32) + bqkv_ref[0]
    q = qkv[:, 0 * D:1 * D] * scale
    k = qkv[:, 1 * D:2 * D]
    v = qkv[:, 2 * D:3 * D]

    # per-head attention (contraction dim = head_dim is intrinsically small; heads are
    # unrolled statically), contexts concatenated so the output projection is ONE
    # full-width (T, D) @ (D, D) matmul instead of n_heads skinny ones.
    ctx = []
    for h in range(n_heads):
        sl = slice(h * hd, (h + 1) * hd)
        s = jnp.dot(q[:, sl], k[:, sl].T, preferred_element_type=jnp.float32)   # (T, T)
        s = s - jnp.max(s, axis=-1, keepdims=True)
        p = jnp.exp(s)
        p = p * pl.reciprocal(jnp.sum(p, axis=-1, keepdims=True), approx=True)
        ctx.append(jnp.dot(p, v[:, sl], preferred_element_type=jnp.float32))    # (T, hd)
    attn = jnp.dot(jnp.concatenate(ctx, axis=-1), ow_ref[0],
                   preferred_element_type=jnp.float32) + ob_ref[0]

    x1 = _layernorm(x + attn, g1_ref[0], be1_ref[0])
    ff = jnp.maximum(
        jnp.dot(x1, w1_ref[0], preferred_element_type=jnp.float32) + b1_ref[0], 0.0)
    ff = jnp.dot(ff, w2_ref[0], preferred_element_type=jnp.float32) + b2_ref[0]
    o_ref[0] = _layernorm(x1 + ff, g2_ref[0], be2_ref[0])


def stacked_transformer(x, wqkv, bqkv, ow, ob, w1, b1, w2, b2,
                        g1, be1, g2, be2, *, n_heads):
    B, T, D = x.shape
    L, _, FF = w1.shape                              # w1 stacked as (L, D, FF)
    act_spec = pl.BlockSpec((1, T, D), lambda b, l: (b, 0, 0))
    lw = lambda shape: pl.BlockSpec(shape, lambda b, l: (l, 0, 0))
    return pl.pallas_call(
        functools.partial(stacked_encoder_kernel, n_heads=n_heads),
        out_shape=jax.ShapeDtypeStruct((B, T, D), jnp.float32),
        grid=(B, L),
        in_specs=[
            act_spec,
            lw((1, D, 3 * D)), lw((1, 1, 3 * D)),
            lw((1, D, D)), lw((1, 1, D)),
            lw((1, D, FF)), lw((1, 1, FF)),
            lw((1, FF, D)), lw((1, 1, D)),
            lw((1, 1, D)), lw((1, 1, D)), lw((1, 1, D)), lw((1, 1, D)),
        ],
        out_specs=pl.BlockSpec((1, T, D), lambda b, l: (b, 0, 0)),
        compiler_params=pltpu.CompilerParams(
            dimension_semantics=("parallel", "arbitrary")),
    )(x, wqkv, bqkv, ow, ob, w1, b1, w2, b2, g1, be1, g2, be2)


# ---------------------------------------------------------------------------
# Kernel 3: EDA (encoder LSTM + decoder LSTM) + counter + logits, all fused
# ---------------------------------------------------------------------------
def eda_logits_kernel(emb_ref, enc_wih_ref, enc_whh_ref, enc_bias_ref,
                      dec_whh_ref, dec_bias_ref, cnt_w_ref, cnt_b_ref,
                      logits_ref, prob_ref, xproj_ref, att_sc):
    B, T, D = emb_ref.shape
    S = att_sc.shape[0]

    enc_wih = enc_wih_ref[...]                       # (D, 4D)
    enc_whh = enc_whh_ref[...]                       # (D, 4D)
    enc_bias = enc_bias_ref[...]                     # (1, 4D) = b_ih + b_hh

    # hoisted, non-recurrent LSTM input projection: one (T,D)@(D,4D) matmul per sequence,
    # written to a time-major VMEM scratch so the recurrence only does h @ whh per step.
    for b in range(B):                               # B is a trace-time constant
        xproj_ref[:, b, :] = (
            jnp.dot(emb_ref[b], enc_wih, preferred_element_type=jnp.float32) + enc_bias)

    def lstm_gates(pre, c):
        i = _sigmoid(pre[:, 0 * D:1 * D])
        f = _sigmoid(pre[:, 1 * D:2 * D])
        g = jnp.tanh(pre[:, 2 * D:3 * D])
        o = _sigmoid(pre[:, 3 * D:4 * D])
        c = f * c + i * g
        h = o * jnp.tanh(c)
        return h, c

    # --- EDA encoder LSTM recurrence (only the recurrent matmul on the serial path) ---
    def enc_step(t, carry):
        h, c = carry
        pre = xproj_ref[t] + jnp.dot(h, enc_whh, preferred_element_type=jnp.float32)
        return lstm_gates(pre, c)

    h0 = jnp.zeros((B, D), jnp.float32)
    c0 = jnp.zeros((B, D), jnp.float32)
    h_e, c_e = lax.fori_loop(0, T, enc_step, (h0, c0))

    # --- EDA decoder LSTM: input is all-zeros so x @ w_ih == 0 and is dropped ---
    dec_whh = dec_whh_ref[...]                       # (D, 4D)
    dec_bias = dec_bias_ref[...]                     # (1, 4D)

    def dec_step(t, carry):
        h, c = carry
        pre = dec_bias + jnp.dot(h, dec_whh, preferred_element_type=jnp.float32)
        h, c = lstm_gates(pre, c)
        att_sc[t] = h                                # attractor for speaker slot t, (B, D)
        return h, c

    lax.fori_loop(0, S, dec_step, (h_e, c_e))

    # --- epilogue: counter probabilities + logits = emb @ attractors^T ---
    cnt_w = cnt_w_ref[...]                           # (D, 1)
    cnt_b = cnt_b_ref[...]                           # (1, 1)
    for b in range(B):
        att_b = att_sc[:, b, :]                      # (S, D)
        logits_ref[b] = jnp.dot(emb_ref[b], att_b.T,
                                preferred_element_type=jnp.float32)          # (T, S)
        prob_ref[b] = _sigmoid(
            jnp.dot(att_b, cnt_w, preferred_element_type=jnp.float32) + cnt_b)  # (S, 1)


# ---------------------------------------------------------------------------
# Full forward pass
# ---------------------------------------------------------------------------
def transformer_eda_forward(xs, n_speakers, params):
    B, T, F = xs.shape
    D = params["enc_w"].shape[0]
    n_heads = params["n_heads"]
    S = max(n_speakers) + 1
    layers = params["layers"]

    # ---- pack per-layer weights into stacked, kernel-friendly layouts ----
    wqkv = jnp.stack([jnp.concatenate([lp["wq"], lp["wk"], lp["wv"]], 0).T for lp in layers])
    bqkv = jnp.stack([jnp.concatenate([lp["bq"], lp["bk"], lp["bv"]], 1) for lp in layers])
    ow = jnp.stack([lp["out_w"].T for lp in layers])
    ob = jnp.stack([lp["out_b"] for lp in layers])
    w1 = jnp.stack([lp["w1"].T for lp in layers])
    b1 = jnp.stack([lp["b1"] for lp in layers])
    w2 = jnp.stack([lp["w2"].T for lp in layers])
    b2 = jnp.stack([lp["b2"] for lp in layers])
    g1 = jnp.stack([lp["ln1_g"] for lp in layers])
    be1 = jnp.stack([lp["ln1_b"] for lp in layers])
    g2 = jnp.stack([lp["ln2_g"] for lp in layers])
    be2 = jnp.stack([lp["ln2_b"] for lp in layers])

    # --- TransformerModel (decode=False) ---
    emb = frontend(xs, params["enc_w"].T, params["enc_b"],
                   params["enc_ln_g"], params["enc_ln_b"])
    emb = stacked_transformer(emb, wqkv, bqkv, ow, ob, w1, b1, w2, b2,
                              g1, be1, g2, be2, n_heads=n_heads)

    # --- EncoderDecoderAttractor + counter + logits, fused into one kernel ---
    enc_bias = params["eda_enc_bih"] + params["eda_enc_bhh"]
    dec_bias = params["eda_dec_bih"] + params["eda_dec_bhh"]
    # NOTE: eda_dec_wih is mathematically unused (decoder input is all zeros).

    def full_spec(shape):
        n = len(shape)
        return pl.BlockSpec(shape, lambda i, n=n: (0,) * n)

    logits, attractors_prob = pl.pallas_call(
        eda_logits_kernel,
        out_shape=(jax.ShapeDtypeStruct((B, T, S), jnp.float32),
                   jax.ShapeDtypeStruct((B, S, 1), jnp.float32)),
        grid_spec=pltpu.PrefetchScalarGridSpec(
            num_scalar_prefetch=0,
            grid=(1,),
            in_specs=[
                full_spec((B, T, D)),
                full_spec((D, 4 * D)), full_spec((D, 4 * D)), full_spec((1, 4 * D)),
                full_spec((D, 4 * D)), full_spec((1, 4 * D)),
                full_spec((D, 1)), full_spec((1, 1)),
            ],
            out_specs=(full_spec((B, T, S)), full_spec((B, S, 1))),
            scratch_shapes=[pltpu.VMEM((T, B, 4 * D), jnp.float32),   # time-major x@Wih
                            pltpu.VMEM((S, B, D), jnp.float32)],       # attractors
        ),
        compiler_params=pltpu.CompilerParams(dimension_semantics=("arbitrary",)),
    )(emb,
      params["eda_enc_wih"].T, params["eda_enc_whh"].T, enc_bias,
      params["eda_dec_whh"].T, dec_bias,
      params["cnt_w"].T, params["cnt_b"])

    return logits, attractors_prob


# ---------------------------------------------------------------------------
# Deterministic parameter construction (synthetic; PyTorch layouts / shapes)
# ---------------------------------------------------------------------------
def init_params(key, in_size, n_units, n_heads, n_layers, dim_ff):
    def u(k, shape, scale=0.1):
        return jax.random.uniform(k, shape, jnp.float32, -scale, scale)

    keys = iter(jax.random.split(key, 8 + 12 * n_layers + 16))
    D, FF = n_units, dim_ff
    p = {"n_heads": n_heads}

    # TransformerModel.encoder / encoder_norm (init_weights: uniform weight, zero bias)
    p["enc_w"] = u(next(keys), (D, in_size))
    p["enc_b"] = jnp.zeros((1, D), jnp.float32)
    p["enc_ln_g"] = jnp.ones((1, D), jnp.float32)
    p["enc_ln_b"] = jnp.zeros((1, D), jnp.float32)

    layers = []
    for _ in range(n_layers):
        lp = {
            "wq": u(next(keys), (D, D)), "wk": u(next(keys), (D, D)),
            "wv": u(next(keys), (D, D)),
            "bq": u(next(keys), (1, D)), "bk": u(next(keys), (1, D)),
            "bv": u(next(keys), (1, D)),
            "out_w": u(next(keys), (D, D)), "out_b": u(next(keys), (1, D)),
            "w1": u(next(keys), (FF, D)), "b1": u(next(keys), (1, FF)),
            "w2": u(next(keys), (D, FF)), "b2": u(next(keys), (1, D)),
            "ln1_g": jnp.ones((1, D), jnp.float32),
            "ln1_b": jnp.zeros((1, D), jnp.float32),
            "ln2_g": jnp.ones((1, D), jnp.float32),
            "ln2_b": jnp.zeros((1, D), jnp.float32),
        }
        layers.append(lp)
    p["layers"] = layers

    # EDA encoder / decoder LSTMs (PyTorch gate order i, f, g, o)
    p["eda_enc_wih"] = u(next(keys), (4 * D, D))
    p["eda_enc_whh"] = u(next(keys), (4 * D, D))
    p["eda_enc_bih"] = u(next(keys), (1, 4 * D))
    p["eda_enc_bhh"] = u(next(keys), (1, 4 * D))
    p["eda_dec_wih"] = u(next(keys), (4 * D, D))   # unused at runtime (zero input)
    p["eda_dec_whh"] = u(next(keys), (4 * D, D))
    p["eda_dec_bih"] = u(next(keys), (1, 4 * D))
    p["eda_dec_bhh"] = u(next(keys), (1, 4 * D))

    # counter: Linear(n_units, 1) + Sigmoid
    p["cnt_w"] = u(next(keys), (1, D))
    p["cnt_b"] = u(next(keys), (1, 1))
    return p


if __name__ == "__main__":
    B, T, in_size = 2, 16, 32
    n_units, n_heads, n_layers, dim_ff = 32, 4, 2, 64
    n_speakers = [2, 3]                              # -> S = max + 1 = 4 attractors

    key = jax.random.PRNGKey(0)
    k_x, k_p = jax.random.split(key)
    xs = jax.random.normal(k_x, (B, T, in_size), jnp.float32)
    params = init_params(k_p, in_size, n_units, n_heads, n_layers, dim_ff)

    # TODO(synk): shuffle=True training path (per-sequence random permutation) and
    # variable-length padding masks are not exercised here (equal lens, eval mode).
    logits, attractors_prob = transformer_eda_forward(xs, n_speakers, params)
    jax.block_until_ready((logits, attractors_prob))

    assert logits.shape == (B, T, max(n_speakers) + 1)
    assert attractors_prob.shape == (B, max(n_speakers) + 1, 1)
    assert bool(jnp.all(jnp.isfinite(logits)))
    assert bool(jnp.all((attractors_prob >= 0) & (attractors_prob <= 1)))
    print("KERNEL_OK")
</pallas_src>

<mosaic_0001>
module attributes {stable_mosaic.version = 11 : i64} {
  func.func @frontend_kernel(%arg0: i32, %arg1: memref<1x16x32xf32, #tpu.memory_space<vmem>>, %arg2: memref<32x32xf32, #tpu.memory_space<vmem>>, %arg3: memref<1x32xf32, #tpu.memory_space<vmem>>, %arg4: memref<1x32xf32, #tpu.memory_space<vmem>>, %arg5: memref<1x32xf32, #tpu.memory_space<vmem>>, %arg6: memref<1x16x32xf32, #tpu.memory_space<vmem>>) attributes {dimension_semantics = [#tpu.dimension_semantics<parallel>], iteration_bounds = array<i64: 2>, scalar_prefetch = 0 : i64, scratch_operands = 0 : i64, tpu.core_type = #tpu.core_type<tc>, window_params = [{transform_indices = @transform_0, window_bounds = array<i64: 1, 16, 32>}, {pipeline_mode = #tpu.pipeline_mode<synchronous>, transform_indices = @transform_1, window_bounds = array<i64: 32, 32>}, {pipeline_mode = #tpu.pipeline_mode<synchronous>, transform_indices = @transform_2, window_bounds = array<i64: 1, 32>}, {pipeline_mode = #tpu.pipeline_mode<synchronous>, transform_indices = @transform_3, window_bounds = array<i64: 1, 32>}, {pipeline_mode = #tpu.pipeline_mode<synchronous>, transform_indices = @transform_4, window_bounds = array<i64: 1, 32>}, {transform_indices = @transform_5, window_bounds = array<i64: 1, 16, 32>}]} {
    %c0 = arith.constant 0 : index
    %c0_0 = arith.constant 0 : index
    %c0_1 = arith.constant 0 : index
    %0 = vector.load %arg1[%c0, %c0_0, %c0_1] : memref<1x16x32xf32, #tpu.memory_space<vmem>>, vector<1x16x32xf32>
    %1 = vector.shape_cast %0 : vector<1x16x32xf32> to vector<16x32xf32>
    %c0_2 = arith.constant 0 : index
    %c0_3 = arith.constant 0 : index
    %2 = vector.load %arg2[%c0_2, %c0_3] : memref<32x32xf32, #tpu.memory_space<vmem>>, vector<32x32xf32>
    %cst = arith.constant dense<0.000000e+00> : vector<16x32xf32>
    %3 = tpu.matmul %1, %2, %cst {dimension_numbers = #tpu.dot_dimension_numbers<[1], [0], [0], [1], [0, 0, 1, 1], [], []>} : vector<16x32xf32>, vector<32x32xf32>, vector<16x32xf32> -> vector<16x32xf32>
    %c0_4 = arith.constant 0 : index
    %c0_5 = arith.constant 0 : index
    %4 = vector.load %arg3[%c0_4, %c0_5] : memref<1x32xf32, #tpu.memory_space<vmem>>, vector<1x32xf32>
    %5 = vector.broadcast %4 : vector<1x32xf32> to vector<16x32xf32>
    %6 = arith.addf %3, %5 : vector<16x32xf32>
    %c0_6 = arith.constant 0 : index
    %c0_7 = arith.constant 0 : index
    %7 = vector.load %arg4[%c0_6, %c0_7] : memref<1x32xf32, #tpu.memory_space<vmem>>, vector<1x32xf32>
    %c0_8 = arith.constant 0 : index
    %c0_9 = arith.constant 0 : index
    %8 = vector.load %arg5[%c0_8, %c0_9] : memref<1x32xf32, #tpu.memory_space<vmem>>, vector<1x32xf32>
    %cst_10 = arith.constant dense<0.000000e+00> : vector<16xf32>
    %9 = vector.multi_reduction <add>, %6, %cst_10 [1] : vector<16x32xf32> to vector<16xf32>
    %10 = vector.shape_cast %9 : vector<16xf32> to vector<16x1xf32>
    %cst_11 = arith.constant 3.200000e+01 : f32
    %11 = vector.broadcast %cst_11 : f32 to vector<16x1xf32>
    %12 = arith.divf %10, %11 : vector<16x1xf32>
    %13 = vector.broadcast %12 : vector<16x1xf32> to vector<16x32xf32>
    %14 = arith.subf %6, %13 : vector<16x32xf32>
    %15 = arith.mulf %14, %14 : vector<16x32xf32>
    %cst_12 = arith.constant dense<0.000000e+00> : vector<16xf32>
    %16 = vector.multi_reduction <add>, %15, %cst_12 [1] : vector<16x32xf32> to vector<16xf32>
    %17 = vector.shape_cast %16 : vector<16xf32> to vector<16x1xf32>
    %cst_13 = arith.constant 3.200000e+01 : f32
    %18 = vector.broadcast %cst_13 : f32 to vector<16x1xf32>
    %19 = arith.divf %17, %18 : vector<16x1xf32>
    %20 = vector.broadcast %12 : vector<16x1xf32> to vector<16x32xf32>
    %21 = arith.subf %6, %20 : vector<16x32xf32>
    %cst_14 = arith.constant 9.99999974E-6 : f32
    %22 = vector.broadcast %cst_14 : f32 to vector<16x1xf32>
    %23 = arith.addf %19, %22 : vector<16x1xf32>
    %24 = math.rsqrt %23 : vector<16x1xf32>
    %25 = vector.broadcast %24 : vector<16x1xf32> to vector<16x32xf32>
    %26 = arith.mulf %21, %25 : vector<16x32xf32>
    %27 = vector.broadcast %7 : vector<1x32xf32> to vector<16x32xf32>
    %28 = arith.mulf %26, %27 : vector<16x32xf32>
    %29 = vector.broadcast %8 : vector<1x32xf32> to vector<16x32xf32>
    %30 = arith.addf %28, %29 : vector<16x32xf32>
    %c0_15 = arith.constant 0 : index
    %c0_16 = arith.constant 0 : index
    %c0_17 = arith.constant 0 : index
    %31 = vector.load %arg6[%c0_15, %c0_16, %c0_17] : memref<1x16x32xf32, #tpu.memory_space<vmem>>, vector<1x16x32xf32>
    %32 = vector.shape_cast %31 : vector<1x16x32xf32> to vector<16x32xf32>
    %33 = vector.shape_cast %30 : vector<16x32xf32> to vector<1x16x32xf32>
    tpu.vector_store %arg6[%c0_15, %c0_16, %c0_17], %33 {strides = array<i32>} : memref<1x16x32xf32, #tpu.memory_space<vmem>>, vector<1x16x32xf32>,
    return
  }
  func.func @transform_0(%arg0: i32) -> (i32, i32, i32) {
    %c0_i32 = arith.constant 0 : i32
    %c0_i32_0 = arith.constant 0 : i32
    %c0_i32_1 = arith.constant 0 : i32
    return %arg0, %c0_i32, %c0_i32_0 : i32, i32, i32
  }
  func.func @transform_1(%arg0: i32) -> (i32, i32) {
    %c0_i32 = arith.constant 0 : i32
    %c0_i32_0 = arith.constant 0 : i32
    %c0_i32_1 = arith.constant 0 : i32
    return %c0_i32, %c0_i32_0 : i32, i32
  }
  func.func @transform_2(%arg0: i32) -> (i32, i32) {
    %c0_i32 = arith.constant 0 : i32
    %c0_i32_0 = arith.constant 0 : i32
    %c0_i32_1 = arith.constant 0 : i32
    return %c0_i32, %c0_i32_0 : i32, i32
  }
  func.func @transform_3(%arg0: i32) -> (i32, i32) {
    %c0_i32 = arith.constant 0 : i32
    %c0_i32_0 = arith.constant 0 : i32
    %c0_i32_1 = arith.constant 0 : i32
    return %c0_i32, %c0_i32_0 : i32, i32
  }
  func.func @transform_4(%arg0: i32) -> (i32, i32) {
    %c0_i32 = arith.constant 0 : i32
    %c0_i32_0 = arith.constant 0 : i32
    %c0_i32_1 = arith.constant 0 : i32
    return %c0_i32, %c0_i32_0 : i32, i32
  }
  func.func @transform_5(%arg0: i32) -> (i32, i32, i32) {
    %c0_i32 = arith.constant 0 : i32
    %c0_i32_0 = arith.constant 0 : i32
    %c0_i32_1 = arith.constant 0 : i32
    return %arg0, %c0_i32, %c0_i32_0 : i32, i32, i32
  }
}

</mosaic_0001>

<llo_original>
// kernel: tpu_custom_call.1
$region0: #{tpu_custom_call.1}
  #allocation0 [shape = 'u32[]', space=smem, size = 0x4, offset = 0x4, fixed_abs, tag = 'smem constant byte address 0x4 - core index']
  #allocation1 [shape = 'u32[144,128]{1,0:T(1,128)}', space=vmem, size = 0x12000, scoped, tag = 'internal scratch']
  %s0 = inlined_call_operand.hbm [shape: f32[2,16,32], index: 0, kind: input, shape index: {}]
  %s1 = inlined_call_operand.hbm [shape: f32[32,32], index: 1, kind: input, shape index: {}]
  %s2 = inlined_call_operand.vmem [shape: f32[1,32], index: 2, kind: input, shape index: {}]
  %s3 = inlined_call_operand.vmem [shape: f32[1,32], index: 3, kind: input, shape index: {}]
  %s4 = inlined_call_operand.vmem [shape: f32[1,32], index: 4, kind: input, shape index: {}]
  %s5 = inlined_call_operand.hbm [shape: f32[2,16,32], index: 5, kind: output, shape index: {}]
  %s6 = sld [smem:[#allocation0]]
  $region61: #{tpu_custom_call.1} parent=0
    _
  %s8 = ssub.s32 1, %s6
  %s9 = scalar_select 0, %s8, %s6
  $region1: #{tpu_custom_call.1} parent=0
    #allocation2 [shape = 'u8[16384]{0}', space=vmem, size = 0x4000, scoped, tag = 'input window, operand 0']
    #allocation3 [shape = 's32[2]{0}', space=sflag, size = 0x8, scoped, tag = 'scoped memory for tpu_custom_call.1']
    #allocation4 [shape = 's32[2]{0}', space=sflag, size = 0x8, scoped, tag = 'scoped memory for tpu_custom_call.1']
    #allocation5 [shape = 'u8[16384]{0}', space=vmem, size = 0x4000, scoped, tag = 'input window, operand 1, single buffered']
    #allocation6 [shape = 's32[1]{0}', space=sflag, size = 0x4, scoped, tag = 'scoped memory for tpu_custom_call.1']
    #allocation7 [shape = 'u8[16384]{0}', space=vmem, size = 0x4000, scoped, tag = 'output window, operand 0']
    %10 = vsyncpa [#allocation3], 0
    %s11 = scalar_lea.sflag [#allocation3], 1
    %12 = vsyncpa %s11, 0
    %13 = vsyncpa [#allocation6], 0
    %14 = vsyncpa [#allocation4], 0
    %s15 = scalar_lea.sflag [#allocation4], 1
    %16 = vsyncpa %s15, 0
    loop: start=0, step=1, limit=4
    $region2: #{tpu_custom_call.1} parent=1 // loop_pre_header
      _
    $region3: #{tpu_custom_call.1} parent=1 // loop_header
      %s18 = sphi 0, %s22
      %p19 = scmp.ge.s32.totalorder %s18, 4
      %s28 = sphi 0, %s30
      %s31 = sphi 0, %s28
      %s32 = sphi 0, %s31
      %s48 = sphi 0, %s32
      %s52 = sphi 0, %s52
      %s54 = sphi 0, %s52
      %s55 = sphi 0, %s54
      %s69 = sphi 0, %s55
      %s73 = sphi 0, %s73
      %s75 = sphi 0, %s73
      %s76 = sphi 0, %s75
      %s90 = sphi 0, %s76
      %s94 = sphi 0, %s94
      %s96 = sphi 0, %s94
      %s97 = sphi 0, %s96
      %s111 = sphi 0, %s97
      %s115 = sphi 0, %s115
      %s117 = sphi 0, %s115
      %s118 = sphi 0, %s117
      %s132 = sphi 0, %s118
      %s138 = sphi 0, %s140
      %s141 = sphi 0, %s138
      %s142 = sphi 0, %s141
      %s158 = sphi 0, %s142
    $region4: #{tpu_custom_call.1} parent=1 // loop_header_branch
      %21 = sbr.rel (%p19) target = $region8
    $region5: #{tpu_custom_call.1} parent=1 // loop_body
      %s23 = ssub.s32 %s18, 1
      %s24 = ssub.s32 %s18, 2
      %s25 = sadd.s32 %s18, 1
      %s26 = ssub.s32 %s18, %s25
      %p27 = scmp.eq.s32.totalorder %s26, 0
      %s29 = sadd.s32 %s28, 1
      %s30 = scalar_select %p27, %s28, %s29
      %p33 = pneg %p27
      %p34 = scmp.eq.s32.totalorder %s18, 1
      %p35 = por %p33, %p34
      %p36 = scmp.ne.s32.totalorder %s28, %s31
      %p37 = scmp.eq.s32.totalorder %s18, 0
      %p38 = por %p36, %p37
      %p39 = scmp.ne.s32.totalorder %s28, %s31
      %p40 = scmp.eq.s32.totalorder %s23, 1
      %p41 = por %p39, %p40
      %p42 = scmp.ne.s32.totalorder %s31, %s32
      %p43 = scmp.eq.s32.totalorder %s23, 0
      %p44 = por %p42, %p43
      %p45 = scmp.ne.s32.totalorder %s31, %s32
      %p46 = scmp.eq.s32.totalorder %s24, 1
      %p47 = por %p45, %p46
      %p49 = scmp.ne.s32.totalorder %s32, %s48
      %p50 = scmp.eq.s32.totalorder %s24, 0
      %p51 = por %p49, %p50
      %s53 = sadd.s32 %s52, 1
      %p56 = scmp.eq.s32.totalorder %s18, 1
      %p57 = scmp.ne.s32.totalorder %s52, %s54
      %p58 = scmp.eq.s32.totalorder %s18, 0
      %p59 = por %p57, %p58
      %p60 = scmp.ne.s32.totalorder %s52, %s54
      %p61 = scmp.eq.s32.totalorder %s23, 1
      %p62 = por %p60, %p61
      %p63 = scmp.ne.s32.totalorder %s54, %s55
      %p64 = scmp.eq.s32.totalorder %s23, 0
      %p65 = por %p63, %p64
      %p66 = scmp.ne.s32.totalorder %s54, %s55
      %p67 = scmp.eq.s32.totalorder %s24, 1
      %p68 = por %p66, %p67
      %p70 = scmp.ne.s32.totalorder %s55, %s69
      %p71 = scmp.eq.s32.totalorder %s24, 0
      %p72 = por %p70, %p71
      %s74 = sadd.s32 %s73, 1
      %p77 = scmp.eq.s32.totalorder %s18, 1
      %p78 = scmp.ne.s32.totalorder %s73, %s75
      %p79 = scmp.eq.s32.totalorder %s18, 0
      %p80 = por %p78, %p79
      %p81 = scmp.ne.s32.totalorder %s73, %s75
      %p82 = scmp.eq.s32.totalorder %s23, 1
      %p83 = por %p81, %p82
      %p84 = scmp.ne.s32.totalorder %s75, %s76
      %p85 = scmp.eq.s32.totalorder %s23, 0
      %p86 = por %p84, %p85
      %p87 = scmp.ne.s32.totalorder %s75, %s76
      %p88 = scmp.eq.s32.totalorder %s24, 1
      %p89 = por %p87, %p88
      %p91 = scmp.ne.s32.totalorder %s76, %s90
      %p92 = scmp.eq.s32.totalorder %s24, 0
      %p93 = por %p91, %p92
      %s95 = sadd.s32 %s94, 1
      %p98 = scmp.eq.s32.totalorder %s18, 1
      %p99 = scmp.ne.s32.totalorder %s94, %s96
      %p100 = scmp.eq.s32.totalorder %s18, 0
      %p101 = por %p99, %p100
      %p102 = scmp.ne.s32.totalorder %s94, %s96
      %p103 = scmp.eq.s32.totalorder %s23, 1
      %p104 = por %p102, %p103
      %p105 = scmp.ne.s32.totalorder %s96, %s97
      %p106 = scmp.eq.s32.totalorder %s23, 0
      %p107 = por %p105, %p106
      %p108 = scmp.ne.s32.totalorder %s96, %s97
      %p109 = scmp.eq.s32.totalorder %s24, 1
      %p110 = por %p108, %p109
      %p112 = scmp.ne.s32.totalorder %s97, %s111
      %p113 = scmp.eq.s32.totalorder %s24, 0
      %p114 = por %p112, %p113
      %s116 = sadd.s32 %s115, 1
      %p119 = scmp.eq.s32.totalorder %s18, 1
      %p120 = scmp.ne.s32.totalorder %s115, %s117
      %p121 = scmp.eq.s32.totalorder %s18, 0
      %p122 = por %p120, %p121
      %p123 = scmp.ne.s32.totalorder %s115, %s117
      %p124 = scmp.eq.s32.totalorder %s23, 1
      %p125 = por %p123, %p124
      %p126 = scmp.ne.s32.totalorder %s117, %s118
      %p127 = scmp.eq.s32.totalorder %s23, 0
      %p128 = por %p126, %p127
      %p129 = scmp.ne.s32.totalorder %s117, %s118
      %p130 = scmp.eq.s32.totalorder %s24, 1
      %p131 = por %p129, %p130
      %p133 = scmp.ne.s32.totalorder %s118, %s132
      %p134 = scmp.eq.s32.totalorder %s24, 0
      %p135 = por %p133, %p134
      %s136 = ssub.s32 %s18, %s25
      %p137 = scmp.eq.s32.totalorder %s136, 0
      %s139 = sadd.s32 %s138, 1
      %s140 = scalar_select %p137, %s138, %s139
      %p143 = pneg %p137
      %p144 = scmp.eq.s32.totalorder %s18, 1
      %p145 = por %p143, %p144
      %p146 = scmp.ne.s32.totalorder %s138, %s141
      %p147 = scmp.eq.s32.totalorder %s18, 0
      %p148 = por %p146, %p147
      %p149 = scmp.ne.s32.totalorder %s138, %s141
      %p150 = scmp.eq.s32.totalorder %s23, 1
      %p151 = por %p149, %p150
      %p152 = scmp.ne.s32.totalorder %s141, %s142
      %p153 = scmp.eq.s32.totalorder %s23, 0
      %p154 = por %p152, %p153
      %p155 = scmp.ne.s32.totalorder %s141, %s142
      %p156 = scmp.eq.s32.totalorder %s24, 1
      %p157 = por %p155, %p156
      %p159 = scmp.ne.s32.totalorder %s142, %s158
      %p160 = scmp.eq.s32.totalorder %s24, 0
      %p161 = por %p159, %p160
      %p162 = scmp.le.s32.totalorder 1, %s18
      %p163 = scmp.lt.s32.totalorder %s18, 3
      %p164 = pnand %p162, %p163
      %p165 = pneg %p164
      // Predicated region
      $region9: #{tpu_custom_call.1} parent=5 // pred_check
        _
      $region10: #{tpu_custom_call.1} parent=5 // pred_check_branch
        %167 = sbr.rel (%p164) target = $region12
      $region11: #{tpu_custom_call.1} parent=5 // pred_region
        %s168 = ssub.s32 %s18, 1
        // Predicated region
        $region13: #{tpu_custom_call.1} parent=11 // pred_check
          %p169 = pneg %p65
        $region14: #{tpu_custom_call.1} parent=11 // pred_check_branch
          %171 = sbr.rel (%p169) target = $region16
        $region15: #{tpu_custom_call.1} parent=11 // pred_region
          %s173 = ssub.s32 512, 512
          %174 = vsyncadd [#allocation6], %s173
          %s175 = sshll.u32 [#allocation5], 4
          %s176 = int_to_ptr.vmem [resolvable:$true] %s175
          %181 = dma.hbm_to_vmem [thread:$0]  %s1, 512, %s176, [#allocation6], 128, 128, 8
        $region16: #{tpu_custom_call.1} parent=11 // pred_fallthru
          _
        // Predicated region
        $region17: #{tpu_custom_call.1} parent=11 // pred_check
          %p182 = pneg %p86
        $region18: #{tpu_custom_call.1} parent=11 // pred_check_branch
          %184 = sbr.rel (%p182) target = $region20
        $region19: #{tpu_custom_call.1} parent=11 // pred_region
          _
        $region20: #{tpu_custom_call.1} parent=11 // pred_fallthru
          _
        // Predicated region
        $region21: #{tpu_custom_call.1} parent=11 // pred_check
          %p185 = pneg %p107
        $region22: #{tpu_custom_call.1} parent=11 // pred_check_branch
          %187 = sbr.rel (%p185) target = $region24
        $region23: #{tpu_custom_call.1} parent=11 // pred_region
          _
        $region24: #{tpu_custom_call.1} parent=11 // pred_fallthru
          _
        // Predicated region
        $region25: #{tpu_custom_call.1} parent=11 // pred_check
          %p188 = pneg %p128
        $region26: #{tpu_custom_call.1} parent=11 // pred_check_branch
          %190 = sbr.rel (%p188) target = $region28
        $region27: #{tpu_custom_call.1} parent=11 // pred_region
          _
        $region28: #{tpu_custom_call.1} parent=11 // pred_fallthru
          _
      $region12: #{tpu_custom_call.1} parent=5 // pred_fallthru
        _
      %p191 = scmp.lt.s32.totalorder %s18, 2
      // Predicated region
      $region29: #{tpu_custom_call.1} parent=5 // pred_check
        %p192 = pneg %p191
      $region30: #{tpu_custom_call.1} parent=5 // pred_check_branch
        %194 = sbr.rel (%p192) target = $region32
      $region31: #{tpu_custom_call.1} parent=5 // pred_region
        // Predicated region
        $region33: #{tpu_custom_call.1} parent=31 // pred_check
          %p195 = pneg %p38
        $region34: #{tpu_custom_call.1} parent=31 // pred_check_branch
          %197 = sbr.rel (%p195) target = $region36
        $region35: #{tpu_custom_call.1} parent=31 // pred_region
          %s198 = sand.u32 %s28, 1
          %s199 = scalar_lea.sflag [#allocation3], %s198
          %s200 = sand.u32 %s28, 1
          %s201 = smul.addr %s200, 16
          %s202 = scalar_lea.vmem [#allocation2], %s201
          %s204 = ssub.s32 256, 256
          %205 = vsyncadd %s199, %s204
          %s206 = smul.addr %s18, 2
          %s207 = smul.addr %s206, 128
          %s208 = scalar_lea.hbm %s0, %s207
          %s209 = sshll.u32 %s202, 4
          %s210 = int_to_ptr.vmem [resolvable:$true] %s209
          %215 = dma.hbm_to_vmem [thread:$0]  %s208, 256, %s210, %s199, 128, 128, 8
        $region36: #{tpu_custom_call.1} parent=31 // pred_fallthru
          _
      $region32: #{tpu_custom_call.1} parent=5 // pred_fallthru
        _
      %p216 = scmp.le.s32.totalorder 1, %s18
      %p217 = scmp.lt.s32.totalorder %s18, 3
      %p218 = pnand %p216, %p217
      %p219 = pneg %p218
      // Predicated region
      $region37: #{tpu_custom_call.1} parent=5 // pred_check
        _
      $region38: #{tpu_custom_call.1} parent=5 // pred_check_branch
        %221 = sbr.rel (%p218) target = $region40
      $region39: #{tpu_custom_call.1} parent=5 // pred_region
        %s222 = ssub.s32 %s18, 1
        %s223 = sand.u32 %s31, 1
        %s224 = scalar_lea.sflag [#allocation3], %s223
        %s225 = sand.u32 %s31, 1
        %s226 = smul.addr %s225, 16
        %s227 = scalar_lea.vmem [#allocation2], %s226
        // Predicated region
        $region41: #{tpu_custom_call.1} parent=39 // pred_check
          %p228 = pneg %p44
        $region42: #{tpu_custom_call.1} parent=39 // pred_check_branch
          %230 = sbr.rel (%p228) target = $region44
        $region43: #{tpu_custom_call.1} parent=39 // pred_region
          %231 = dma.done %s224, 256
        $region44: #{tpu_custom_call.1} parent=39 // pred_fallthru
          _
        // Predicated region
        $region45: #{tpu_custom_call.1} parent=39 // pred_check
          %p232 = pneg %p65
        $region46: #{tpu_custom_call.1} parent=39 // pred_check_branch
          %234 = sbr.rel (%p232) target = $region48
        $region47: #{tpu_custom_call.1} parent=39 // pred_region
          %235 = dma.done [#allocation6], 512
        $region48: #{tpu_custom_call.1} parent=39 // pred_fallthru
          _
        %s236 = sand.u32 %s31, 1
        %s237 = scalar_lea.sflag [#allocation3], %s236
        %s238 = sand.u32 %s31, 1
        %s239 = smul.addr %s238, 16
        %s240 = scalar_lea.vmem [#allocation2], %s239
        %p241 = pneg %p44
        %p242 = pneg %p41
        %p243 = pneg %p65
        %p244 = pneg %p62
        %p245 = pneg %p86
        %p246 = pneg %p83
        %p247 = pneg %p107
        %p248 = pneg %p104
        %p249 = pneg %p128
        %p250 = pneg %p125
        %p251 = pneg %p154
        %p252 = pneg %p151
        %s253 = sand.u32 %s141, 1
        %s254 = scalar_lea.sflag [#allocation4], %s253
        %s255 = sand.u32 %s141, 1
        %s256 = smul.addr %s255, 16
        %s257 = scalar_lea.vmem [#allocation7], %s256
        %v258 = vld [vmem:[%s227] sm:$0xff]
        %v259 = vld [vmem:[%s227 + $0x8] sm:$0xff]
        %v260 = vld [vmem:[#allocation5] sm:$0xff]
        %v261 = vld [vmem:[#allocation5 + $0x8] sm:$0xff]
        %v262 = vld [vmem:[#allocation5 + $0x10] sm:$0xff]
        %v263 = vld [vmem:[#allocation5 + $0x18] sm:$0xff]
        %v264 = vld [vmem:[%s2] sm:$0x1]
        %v266 = vlaneseq
        %v267 = vshrl.u32 %v266, 7
        %v268 = vsub.s32 0, %v267
        %v269 = vrot.slane %v264, %v268
        %vm271 = vcmask 261120
        %v273 = vsel %vm271, %v258, 0
        %v276 = vsel %vm271, %v259, 0
        %278 = vmatprep.subr.mxu0 0.0
        %279 = vmatpush1.msra.mxu0 0.0
        %280 = vmatprep.subr.mxu0 0.0
        %281 = vmatpush1.msra.mxu0 0.0
        %282 = vmatprep.subr.mxu0 0.0
        %283 = vmatpush1.msra.mxu0 0.0
        %284 = vmatprep.subr.mxu0 0.0
        %285 = vmatpush1.msra.mxu0 0.0
        %286 = vmatprep.subr.mxu0 0.0
        %287 = vmatpush1.msra.mxu0 0.0
        %288 = vmatprep.subr.mxu0 0.0
        %289 = vmatpush1.msra.mxu0 0.0
        %290 = vmatprep.subr.mxu0 0.0
        %291 = vmatpush1.msra.mxu0 0.0
        %292 = vmatprep.subr.mxu0 0.0
        %293 = vmatpush1.msra.mxu0 0.0
        %294 = vmatprep.subr.mxu0 0.0
        %295 = vmatpush1.msra.mxu0 0.0
        %296 = vmatprep.subr.mxu0 0.0
        %297 = vmatpush1.msra.mxu0 0.0
        %298 = vmatprep.subr.mxu0 0.0
        %299 = vmatpush1.msra.mxu0 0.0
        %300 = vmatprep.subr.mxu0 0.0
        %301 = vmatpush1.msra.mxu0 0.0
        %302 = vmatprep.subr.mxu0 0.0
        %303 = vmatpush1.msra.mxu0 %v263
        %304 = vmatprep.subr.mxu0 0.0
        %305 = vmatpush1.msra.mxu0 %v262
        %306 = vmatprep.subr.mxu0 0.0
        %307 = vmatpush1.msra.mxu0 %v261
        %308 = vmatprep.subr.mxu0 0.0
        %309 = vmatpush1.msra.mxu0 %v260
        %310 = vmatprep.subr.mxu0 0.0
        %311 = vmatpush2.msra.mxu0 0.0
        %312 = vmatprep.subr.mxu0 0.0
        %313 = vmatpush2.msra.mxu0 0.0
        %314 = vmatprep.subr.mxu0 0.0
        %315 = vmatpush2.msra.mxu0 0.0
        %316 = vmatprep.subr.mxu0 0.0
        %317 = vmatpush2.msra.mxu0 0.0
        %318 = vmatprep.subr.mxu0 0.0
        %319 = vmatpush2.msra.mxu0 0.0
        %320 = vmatprep.subr.mxu0 0.0
        %321 = vmatpush2.msra.mxu0 0.0
        %322 = vmatprep.subr.mxu0 0.0
        %323 = vmatpush2.msra.mxu0 0.0
        %324 = vmatprep.subr.mxu0 0.0
        %325 = vmatpush2.msra.mxu0 0.0
        %326 = vmatprep.subr.mxu0 0.0
        %327 = vmatpush2.msra.mxu0 0.0
        %328 = vmatprep.subr.mxu0 0.0
        %329 = vmatpush2.msra.mxu0 0.0
        %330 = vmatprep.subr.mxu0 0.0
        %331 = vmatpush2.msra.mxu0 0.0
        %332 = vmatprep.subr.mxu0 0.0
        %333 = vmatpush2.msra.mxu0 0.0
        %334 = vmatprep.subr.mxu0 0.0
        %335 = vmatpush2.msra.mxu0 0.0
        %336 = vmatprep.subr.mxu0 0.0
        %337 = vmatpush2.msra.mxu0 0.0
        %338 = vmatprep.subr.mxu0 0.0
        %339 = vmatpush2.msra.mxu0 0.0
        %340 = vmatprep.subr.mxu0 0.0
        %341 = vmatpush2.msra.mxu0 0.0
        %342 = vmatprep.mubr.f32.mxu0 0.0
        %343 = vmatmul.mubr.f32.gmra.mxu0 %v273
        %v344 = vpop.f32.mrf.mxu0
        %v345 = vadd.f32 %v269, %v344
        %v346 = vpop.f32.mrf.mxu0
        %347 = vmatprep.mubr.f32.mxu0 0.0
        %348 = vmatmul.mubr.f32.gmra.mxu0 %v276
        %v349 = vpop.f32.mrf.mxu0
        %v350 = vadd.f32 %v269, %v349
        %v351 = vpop.f32.mrf.mxu0
        %352 = vdwg.mxu0
        %v353 = vld [vmem:[%s3] sm:$0x1]
        %v354 = vld [vmem:[%s4] sm:$0x1]
        %v355 = vsel %vm271, %v345, 0.0
        %356 = vadd.xlane.f32.xlu0 %v355
        %v357 = vpop.xlane.xlu0 %356
        %v358 = vsel %vm271, %v350, 0.0
        %359 = vadd.xlane.f32.xlu0 %v358
        %v360 = vpop.xlane.xlu0 %359
        %v361 = vrcp.pop 32.0
        %v362 = vmul.f32 %v357, %v361
        %v363 = vmul.f32 %v360, %v361
        %v364 = vsub.f32 %v345, %v362
        %v365 = vsub.f32 %v350, %v363
        %v366 = vmul.f32 %v364, %v364
        %v367 = vmul.f32 %v365, %v365
        %v368 = vsel %vm271, %v366, 0.0
        %369 = vadd.xlane.f32.xlu0 %v368
        %v370 = vpop.xlane.xlu0 %369
        %v371 = vsel %vm271, %v367, 0.0
        %372 = vadd.xlane.f32.xlu0 %v371
        %v373 = vpop.xlane.xlu0 %372
        %v374 = vmul.f32 %v370, %v361
        %v375 = vmul.f32 %v373, %v361
        %v376 = vadd.f32 %v374, 1e-05
        %v377 = vadd.f32 %v375, 1e-05
        %v378 = vrsqrt.pop %v376
        %v379 = vrsqrt.pop %v377
        %v380 = vmul.f32 %v364, %v378
        %v381 = vmul.f32 %v365, %v379
        %v383 = vlaneseq
        %v384 = vshrl.u32 %v383, 7
        %v385 = vsub.s32 0, %v384
        %v386 = vrot.slane %v353, %v385
        %v388 = vmul.f32 %v380, %v386
        %v389 = vmul.f32 %v381, %v386
        %v391 = vlaneseq
        %v392 = vshrl.u32 %v391, 7
        %v393 = vsub.s32 0, %v392
        %v394 = vrot.slane %v354, %v393
        %v396 = vadd.f32 %v388, %v394
        %v397 = vadd.f32 %v389, %v394
        %398 = vst.msk [vmem:[%s257] sm:$0xff] %vm271, %v396
        %399 = vst.msk [vmem:[%s257 + $0x8] sm:$0xff] %vm271, %v397
        %s400 = sand.u32 %s141, 1
        %s401 = scalar_lea.sflag [#allocation4], %s400
        %s402 = sand.u32 %s141, 1
        %s403 = smul.addr %s402, 16
        %s404 = scalar_lea.vmem [#allocation7], %s403
        // Predicated region
        $region49: #{tpu_custom_call.1} parent=39 // pred_check
          %p405 = pneg %p151
        $region50: #{tpu_custom_call.1} parent=39 // pred_check_branch
          %407 = sbr.rel (%p405) target = $region52
        $region51: #{tpu_custom_call.1} parent=39 // pred_region
          %s409 = ssub.s32 256, 256
          %410 = vsyncadd %s401, %s409
          %s411 = smul.addr %s23, 2
          %s412 = smul.addr %s411, 128
          %s413 = scalar_lea.hbm %s5, %s412
          %s414 = sshll.u32 %s404, 4
          %s415 = int_to_ptr.vmem [resolvable:$true] %s414
          %420 = dma.vmem_to_hbm [thread:$0]  %s415, 256, %s413, %s401, 128, 128, 8
        $region52: #{tpu_custom_call.1} parent=39 // pred_fallthru
          _
      $region40: #{tpu_custom_call.1} parent=5 // pred_fallthru
        _
      %p421 = scmp.le.s32.totalorder 2, %s18
      // Predicated region
      $region53: #{tpu_custom_call.1} parent=5 // pred_check
        %p422 = pneg %p421
      $region54: #{tpu_custom_call.1} parent=5 // pred_check_branch
        %424 = sbr.rel (%p422) target = $region56
      $region55: #{tpu_custom_call.1} parent=5 // pred_region
        %s425 = ssub.s32 %s18, 2
        // Predicated region
        $region57: #{tpu_custom_call.1} parent=55 // pred_check
          %p426 = pneg %p157
        $region58: #{tpu_custom_call.1} parent=55 // pred_check_branch
          %428 = sbr.rel (%p426) target = $region60
        $region59: #{tpu_custom_call.1} parent=55 // pred_region
          %s429 = sand.u32 %s142, 1
          %s430 = scalar_lea.sflag [#allocation4], %s429
          %s431 = sand.u32 %s142, 1
          %s432 = smul.addr %s431, 16
          %s433 = scalar_lea.vmem [#allocation7], %s432
          %434 = dma.done %s430, 256
        $region60: #{tpu_custom_call.1} parent=55 // pred_fallthru
          _
      $region56: #{tpu_custom_call.1} parent=5 // pred_fallthru
        _
    $region6: #{tpu_custom_call.1} parent=1 // loop_footer
      %s22 = sadd.s32 1, %s18
    $region7: #{tpu_custom_call.1} parent=1 // loop_footer_branch
      %17 = sbr.rel target = $region3
    $region8: #{tpu_custom_call.1} parent=1 // loop_exit
      _
    %435 = vsyncpa [#allocation3], 1
    %s436 = scalar_lea.sflag [#allocation3], 1
    %437 = vsyncpa %s436, 1
    %438 = vsyncpa [#allocation6], 1
    %439 = vsyncpa [#allocation4], 1
    %s440 = scalar_lea.sflag [#allocation4], 1
    %441 = vsyncpa %s440, 1

</llo_original>
